<compile_context>
chip_gen: v6e
topology: v6e:2x2x1
jax: 0.10.0
libtpu: 0.0.40
codegen_flags: <defaults>
</compile_context>

<pallas_src>
import functools

import jax
import jax.numpy as jnp
from jax.experimental import pallas as pl
from jax.experimental.pallas import tpu as pltpu


def _round_up(x, m):
    return (x + m - 1) // m * m


def _cdiv(a, b):
    return -(-a // b)


def _vmem_capacity_bytes():
    """Physical per-core VMEM in bytes; conservative fallback if unqueryable."""
    try:
        info = pltpu.get_tpu_info()
        cap = getattr(info, "vmem_capacity_bytes", None)
        if cap:
            return int(cap)
    except Exception:
        pass
    return 64 << 20  # v7x per-TC size == safe lower bound across generations


def _vmem_estimate_bytes(tt, n_t, c_in_p, c_out_p, dilation, itemsize):
    """Rough VMEM footprint of one pipelined grid step."""
    dbl = 2  # double-buffered pipeline blocks
    x_blk = dbl * c_in_p * tt * itemsize
    tails = dbl * n_t * c_in_p * dilation * itemsize
    w = dbl * 2 * (2 * c_out_p) * c_in_p * itemsize
    outs = dbl * 2 * c_out_p * tt * itemsize
    # in-kernel temporaries: shifted input tile, f32 accumulator, output casts
    temps = (c_in_p * tt * itemsize
             + 2 * c_out_p * tt * 4
             + 2 * c_out_p * tt * itemsize)
    return x_blk + tails + w + outs + temps


def _choose_time_tile(T, dilation, c_in_p, c_out_p, itemsize, budget,
                      max_time_tile):
    """Largest 128-multiple time tile (> dilation) that fits the VMEM budget."""
    t_aligned = _round_up(T, 128)
    tt_min = _round_up(dilation + 1, 128)      # one previous tile covers the halo
    tt = min(4096, t_aligned)
    if max_time_tile is not None:
        tt = min(tt, _round_up(max_time_tile, 128))
    tt = max(tt, tt_min)
    while tt > tt_min and _vmem_estimate_bytes(
            tt, _cdiv(T, tt), c_in_p, c_out_p, dilation, itemsize) > budget:
        tt -= 128
    return tt


def _dilated_causal_conv_kernel(x_ref, tail_ref, w0_ref, w1_ref,
                                filt_ref, gate_ref, *, dilation, c_out_p):
    """One grid step = (batch b, time tile i).

    x_ref    : (1, C_in_p, TT)            current time tile of the input
    tail_ref : (1, nT, C_in_p, dilation)  per-batch halo block (last `dilation`
                                          columns of every previous tile;
                                          zeros for tile 0)
    w0_ref   : (2*C_out_p, C_in_p)        tap-0 weights, rows = [filter; gate]
    w1_ref   : (2*C_out_p, C_in_p)        tap-1 weights, rows = [filter; gate]
    filt_ref : (1, C_out_p, TT)           filter-conv output tile
    gate_ref : (1, C_out_p, TT)           gate-conv output tile
    """
    i = pl.program_id(1)
    tt = x_ref.shape[-1]
    x = x_ref[0]                                   # (C_in_p, TT)
    tail = tail_ref[0, i]                          # (C_in_p, dilation)

    # Causally shifted tile: x_prev[:, t] = x_global[:, t - dilation].
    # Materialized ONCE in VMEM; the (2*C_in_p, TT) stacked-tap copy of the
    # previous version is gone -- the two taps are two accumulated matmuls.
    x_prev = jnp.concatenate([tail, x[:, : tt - dilation]], axis=1)

    # Filter and gate convs fused along the MXU M dimension.
    y = (jnp.dot(w1_ref[...], x, preferred_element_type=jnp.float32)
         + jnp.dot(w0_ref[...], x_prev, preferred_element_type=jnp.float32))

    filt_ref[0] = y[:c_out_p].astype(filt_ref.dtype)
    gate_ref[0] = y[c_out_p:].astype(gate_ref.dtype)

    # F.pad(out, (dilation, 0)): the first `dilation` samples of every
    # sequence are zero; only the first time tile of each batch is affected.
    @pl.when(i == 0)
    def _zero_causal_pad():
        z = jnp.zeros((c_out_p, dilation), filt_ref.dtype)
        filt_ref[0, :, :dilation] = z
        gate_ref[0, :, :dilation] = z


def dilated_causal_convolution(x, w_filter, w_gate, dilation, *,
                               io_dtype=None, max_time_tile=None):
    """x: (B, C_in, T); w_*: (C_out, C_in, 2) in nn.Conv1d layout.

    io_dtype: optional compute/storage dtype for the kernel (e.g. bf16 for an
              intentional precision/bandwidth trade-off); defaults to x.dtype.
    Returns (filter_output, gate_output), each (B, C_out, T).
    """
    B, C_in, T = x.shape
    C_out = w_filter.shape[0]
    assert w_filter.shape == (C_out, C_in, 2)
    assert w_gate.shape == (C_out, C_in, 2)
    assert 1 <= dilation < T, "valid dilated conv (k=2) needs dilation < T"

    compute_dtype = jnp.dtype(io_dtype) if io_dtype is not None else jnp.dtype(x.dtype)
    itemsize = compute_dtype.itemsize

    # ---- layout decisions (plain-JAX glue) ---------------------------------
    C_in_p = _round_up(C_in, 8)       # sublane-align the contraction dim
    C_out_p = _round_up(C_out, 8)     # sublane-align each output half

    vmem_cap = _vmem_capacity_bytes()
    vmem_limit = int(min(max((vmem_cap * 3) // 4, 32 << 20), 96 << 20))
    budget = (vmem_limit * 3) // 4    # headroom for compiler-internal scratch

    TT = _choose_time_tile(T, dilation, C_in_p, C_out_p, itemsize, budget,
                           max_time_tile)
    # v7x megacore: prefer >= 2 grid steps when the batch alone cannot fill
    # both TensorCores.
    if B == 1 and _cdiv(T, TT) < 2:
        half = _round_up(_cdiv(T, 2), 128)
        if dilation < half < TT:
            TT = half
    T_pad = _round_up(T, TT)
    nT = T_pad // TT

    # Cast / pad only when actually needed (no extra HBM pass otherwise).
    x_c = x.astype(compute_dtype) if x.dtype != compute_dtype else x
    pad_c, pad_t = C_in_p - C_in, T_pad - T
    x_p = jnp.pad(x_c, ((0, 0), (0, pad_c), (0, pad_t))) if (pad_c or pad_t) else x_c

    # Halo ("tails"): for every (b, tile i) the last `dilation` columns of
    # tile i-1; zeros for tile 0 (== the causal pad region).  All tails of a
    # batch travel in one block that is revisited across the time-tile axis.
    if nT > 1:
        xr = x_p.reshape(B, C_in_p, nT, TT)
        tails = xr[:, :, : nT - 1, TT - dilation:]              # (B, C_in_p, nT-1, d)
        tails = jnp.pad(tails, ((0, 0), (0, 0), (1, 0), (0, 0)))
        tails = jnp.transpose(tails, (0, 2, 1, 3))              # (B, nT, C_in_p, d)
    else:
        tails = jnp.zeros((B, 1, C_in_p, dilation), compute_dtype)

    # Weights: rows = [filter; gate] (fused M dim); one matrix per tap.
    def _prep_w(w2d):  # (C_out, C_in) -> (C_out_p, C_in_p) in compute dtype
        if w2d.dtype != compute_dtype:
            w2d = w2d.astype(compute_dtype)
        if (C_out_p - C_out) or (C_in_p - C_in):
            w2d = jnp.pad(w2d, ((0, C_out_p - C_out), (0, C_in_p - C_in)))
        return w2d

    w0 = jnp.concatenate([_prep_w(w_filter[:, :, 0]), _prep_w(w_gate[:, :, 0])], axis=0)
    w1 = jnp.concatenate([_prep_w(w_filter[:, :, 1]), _prep_w(w_gate[:, :, 1])], axis=0)

    kernel = functools.partial(_dilated_causal_conv_kernel,
                               dilation=dilation, c_out_p=C_out_p)

    out_sds = jax.ShapeDtypeStruct((B, C_out_p, T_pad), compute_dtype)

    filt, gate = pl.pallas_call(
        kernel,
        out_shape=(out_sds, out_sds),
        grid=(B, nT),
        in_specs=[
            pl.BlockSpec((1, C_in_p, TT), lambda b, i: (b, 0, i)),
            pl.BlockSpec((1, nT, C_in_p, dilation), lambda b, i: (b, 0, 0, 0)),
            pl.BlockSpec((2 * C_out_p, C_in_p), lambda b, i: (0, 0)),
            pl.BlockSpec((2 * C_out_p, C_in_p), lambda b, i: (0, 0)),
        ],
        out_specs=(
            pl.BlockSpec((1, C_out_p, TT), lambda b, i: (b, 0, i)),
            pl.BlockSpec((1, C_out_p, TT), lambda b, i: (b, 0, i)),
        ),
        compiler_params=pltpu.CompilerParams(
            dimension_semantics=("parallel", "parallel"),
            vmem_limit_bytes=vmem_limit,
        ),
    )(x_p, tails, w0, w1)

    if C_out_p != C_out or T_pad != T:
        filt = filt[:, :C_out, :T]
        gate = gate[:, :C_out, :T]
    return filt, gate


def _reference(x, w_filter, w_gate, dilation):
    """Plain-JAX reference mirroring the PyTorch forward (fp32, exact)."""
    T = x.shape[2]
    hi = jax.lax.Precision.HIGHEST

    def conv(w):
        y = (jnp.einsum("oc,bct->bot", w[:, :, 0], x[:, :, : T - dilation], precision=hi)
             + jnp.einsum("oc,bct->bot", w[:, :, 1], x[:, :, dilation:], precision=hi))
        return jnp.pad(y, ((0, 0), (0, 0), (dilation, 0)))

    return conv(w_filter), conv(w_gate)


if __name__ == "__main__":
    root_key = jax.random.PRNGKey(0)

    def run_case(idx, B, C_in, C_out, T, dilation, io_dtype=None,
                 max_time_tile=None, atol=1e-4, rtol=1e-4):
        kk = jax.random.fold_in(root_key, idx)
        kx, kf, kg = jax.random.split(kk, 3)
        x = jax.random.normal(kx, (B, C_in, T), dtype=jnp.float32)
        # nn.Conv1d weight layout: (out_channels, in_channels, kernel_size=2)
        wf = jax.random.normal(kf, (C_out, C_in, 2), dtype=jnp.float32) * 0.3
        wg = jax.random.normal(kg, (C_out, C_in, 2), dtype=jnp.float32) * 0.3

        filt, gate = dilated_causal_convolution(
            x, wf, wg, dilation, io_dtype=io_dtype, max_time_tile=max_time_tile)
        jax.block_until_ready((filt, gate))

        ref_f, ref_g = _reference(x, wf, wg, dilation)
        assert filt.shape == (B, C_out, T) and gate.shape == (B, C_out, T)
        assert jnp.allclose(filt.astype(jnp.float32), ref_f, atol=atol, rtol=rtol), \
            f"filter mismatch (case {idx})"
        assert jnp.allclose(gate.astype(jnp.float32), ref_g, atol=atol, rtol=rtol), \
            f"gate mismatch (case {idx})"

    # 1) module-default fp32 path, single time tile
    run_case(0, B=2, C_in=4, C_out=8, T=16, dilation=2)
    # 2) multi-tile halo path (force small 128-wide tiles to exercise tails)
    run_case(1, B=2, C_in=8, C_out=8, T=300, dilation=4, max_time_tile=128)
    # 3) bf16 I/O fast path (intentional precision trade-off -> loose tol)
    run_case(2, B=2, C_in=4, C_out=8, T=16, dilation=2,
             io_dtype=jnp.bfloat16, atol=1e-1, rtol=1e-1)

    print("KERNEL_OK")
</pallas_src>

<mosaic_0001>
module attributes {stable_mosaic.version = 11 : i64} {
  func.func @_dilated_causal_conv_kernel(%arg0: i32, %arg1: i32, %arg2: memref<1x8x128xf32, #tpu.memory_space<vmem>>, %arg3: memref<1x1x8x2xf32, #tpu.memory_space<vmem>>, %arg4: memref<16x8xf32, #tpu.memory_space<vmem>>, %arg5: memref<16x8xf32, #tpu.memory_space<vmem>>, %arg6: memref<1x8x128xf32, #tpu.memory_space<vmem>>, %arg7: memref<1x8x128xf32, #tpu.memory_space<vmem>>) attributes {dimension_semantics = [#tpu.dimension_semantics<parallel>, #tpu.dimension_semantics<parallel>], iteration_bounds = array<i64: 2, 1>, scalar_prefetch = 0 : i64, scratch_operands = 0 : i64, tpu.core_type = #tpu.core_type<tc>, window_params = [{transform_indices = @transform_0, window_bounds = array<i64: 1, 8, 128>}, {transform_indices = @transform_1, window_bounds = array<i64: 1, 1, 8, 2>}, {pipeline_mode = #tpu.pipeline_mode<synchronous>, transform_indices = @transform_2, window_bounds = array<i64: 16, 8>}, {pipeline_mode = #tpu.pipeline_mode<synchronous>, transform_indices = @transform_3, window_bounds = array<i64: 16, 8>}, {transform_indices = @transform_4, window_bounds = array<i64: 1, 8, 128>}, {transform_indices = @transform_5, window_bounds = array<i64: 1, 8, 128>}]} {
    %c0 = arith.constant 0 : index
    %c0_0 = arith.constant 0 : index
    %c0_1 = arith.constant 0 : index
    %0 = vector.load %arg2[%c0, %c0_0, %c0_1] : memref<1x8x128xf32, #tpu.memory_space<vmem>>, vector<1x8x128xf32>
    %1 = vector.shape_cast %0 : vector<1x8x128xf32> to vector<8x128xf32>
    %c0_2 = arith.constant 0 : index
    %2 = arith.index_cast %arg1 : i32 to index
    %c0_3 = arith.constant 0 : index
    %c0_4 = arith.constant 0 : index
    %3 = vector.load %arg3[%c0_2, %2, %c0_3, %c0_4] : memref<1x1x8x2xf32, #tpu.memory_space<vmem>>, vector<1x1x8x2xf32>
    %4 = vector.shape_cast %3 : vector<1x1x8x2xf32> to vector<8x2xf32>
    %5 = vector.extract_strided_slice %1 {offsets = [0, 0], sizes = [8, 126], strides = [1, 1]} : vector<8x128xf32> to vector<8x126xf32>
    %6 = tpu.concatenate %4, %5 in 1 : vector<8x2xf32>, vector<8x126xf32> -> vector<8x128xf32>
    %c0_5 = arith.constant 0 : index
    %c0_6 = arith.constant 0 : index
    %7 = vector.load %arg5[%c0_5, %c0_6] : memref<16x8xf32, #tpu.memory_space<vmem>>, vector<16x8xf32>
    %cst = arith.constant dense<0.000000e+00> : vector<16x128xf32>
    %8 = tpu.matmul %7, %1, %cst {dimension_numbers = #tpu.dot_dimension_numbers<[1], [0], [0], [1], [0, 0, 1, 1], [], []>} : vector<16x8xf32>, vector<8x128xf32>, vector<16x128xf32> -> vector<16x128xf32>
    %c0_7 = arith.constant 0 : index
    %c0_8 = arith.constant 0 : index
    %9 = vector.load %arg4[%c0_7, %c0_8] : memref<16x8xf32, #tpu.memory_space<vmem>>, vector<16x8xf32>
    %cst_9 = arith.constant dense<0.000000e+00> : vector<16x128xf32>
    %10 = tpu.matmul %9, %6, %cst_9 {dimension_numbers = #tpu.dot_dimension_numbers<[1], [0], [0], [1], [0, 0, 1, 1], [], []>} : vector<16x8xf32>, vector<8x128xf32>, vector<16x128xf32> -> vector<16x128xf32>
    %11 = arith.addf %8, %10 : vector<16x128xf32>
    %12 = vector.extract_strided_slice %11 {offsets = [0, 0], sizes = [8, 128], strides = [1, 1]} : vector<16x128xf32> to vector<8x128xf32>
    %c0_10 = arith.constant 0 : index
    %c0_11 = arith.constant 0 : index
    %c0_12 = arith.constant 0 : index
    %13 = vector.load %arg6[%c0_10, %c0_11, %c0_12] : memref<1x8x128xf32, #tpu.memory_space<vmem>>, vector<1x8x128xf32>
    %14 = vector.shape_cast %13 : vector<1x8x128xf32> to vector<8x128xf32>
    %15 = vector.shape_cast %12 : vector<8x128xf32> to vector<1x8x128xf32>
    tpu.vector_store %arg6[%c0_10, %c0_11, %c0_12], %15 {strides = array<i32>} : memref<1x8x128xf32, #tpu.memory_space<vmem>>, vector<1x8x128xf32>,
    %16 = vector.extract_strided_slice %11 {offsets = [8, 0], sizes = [8, 128], strides = [1, 1]} : vector<16x128xf32> to vector<8x128xf32>
    %c0_13 = arith.constant 0 : index
    %c0_14 = arith.constant 0 : index
    %c0_15 = arith.constant 0 : index
    %17 = vector.load %arg7[%c0_13, %c0_14, %c0_15] : memref<1x8x128xf32, #tpu.memory_space<vmem>>, vector<1x8x128xf32>
    %18 = vector.shape_cast %17 : vector<1x8x128xf32> to vector<8x128xf32>
    %19 = vector.shape_cast %16 : vector<8x128xf32> to vector<1x8x128xf32>
    tpu.vector_store %arg7[%c0_13, %c0_14, %c0_15], %19 {strides = array<i32>} : memref<1x8x128xf32, #tpu.memory_space<vmem>>, vector<1x8x128xf32>,
    %c0_i32 = arith.constant 0 : i32
    %20 = arith.cmpi eq, %arg1, %c0_i32 : i32
    %21 = arith.extui %20 : i1 to i32
    %c0_i32_16 = arith.constant 0 : i32
    %22 = arith.cmpi ne, %21, %c0_i32_16 : i32
    scf.if %22 {
      %cst_17 = arith.constant 0.000000e+00 : f32
      %23 = vector.broadcast %cst_17 : f32 to vector<8x2xf32>
      %c0_18 = arith.constant 0 : index
      %c0_19 = arith.constant 0 : index
      %c0_20 = arith.constant 0 : index
      %24 = vector.load %arg6[%c0_18, %c0_19, %c0_20] : memref<1x8x128xf32, #tpu.memory_space<vmem>>, vector<1x8x2xf32>
      %25 = vector.shape_cast %24 : vector<1x8x2xf32> to vector<8x2xf32>
      %26 = vector.shape_cast %23 : vector<8x2xf32> to vector<1x8x2xf32>
      tpu.vector_store %arg6[%c0_18, %c0_19, %c0_20], %26 {strides = array<i32>} : memref<1x8x128xf32, #tpu.memory_space<vmem>>, vector<1x8x2xf32>,
      %c0_21 = arith.constant 0 : index
      %c0_22 = arith.constant 0 : index
      %c0_23 = arith.constant 0 : index
      %27 = vector.load %arg7[%c0_21, %c0_22, %c0_23] : memref<1x8x128xf32, #tpu.memory_space<vmem>>, vector<1x8x2xf32>
      %28 = vector.shape_cast %27 : vector<1x8x2xf32> to vector<8x2xf32>
      %29 = vector.shape_cast %23 : vector<8x2xf32> to vector<1x8x2xf32>
      tpu.vector_store %arg7[%c0_21, %c0_22, %c0_23], %29 {strides = array<i32>} : memref<1x8x128xf32, #tpu.memory_space<vmem>>, vector<1x8x2xf32>,
    } else {
    }
    return
  }
  func.func @transform_0(%arg0: i32, %arg1: i32) -> (i32, i32, i32) {
    %c0_i32 = arith.constant 0 : i32
    %c0_i32_0 = arith.constant 0 : i32
    return %arg0, %c0_i32, %arg1 : i32, i32, i32
  }
  func.func @transform_1(%arg0: i32, %arg1: i32) -> (i32, i32, i32, i32) {
    %c0_i32 = arith.constant 0 : i32
    %c0_i32_0 = arith.constant 0 : i32
    %c0_i32_1 = arith.constant 0 : i32
    %c0_i32_2 = arith.constant 0 : i32
    return %arg0, %c0_i32, %c0_i32_0, %c0_i32_1 : i32, i32, i32, i32
  }
  func.func @transform_2(%arg0: i32, %arg1: i32) -> (i32, i32) {
    %c0_i32 = arith.constant 0 : i32
    %c0_i32_0 = arith.constant 0 : i32
    %c0_i32_1 = arith.constant 0 : i32
    return %c0_i32, %c0_i32_0 : i32, i32
  }
  func.func @transform_3(%arg0: i32, %arg1: i32) -> (i32, i32) {
    %c0_i32 = arith.constant 0 : i32
    %c0_i32_0 = arith.constant 0 : i32
    %c0_i32_1 = arith.constant 0 : i32
    return %c0_i32, %c0_i32_0 : i32, i32
  }
  func.func @transform_4(%arg0: i32, %arg1: i32) -> (i32, i32, i32) {
    %c0_i32 = arith.constant 0 : i32
    %c0_i32_0 = arith.constant 0 : i32
    return %arg0, %c0_i32, %arg1 : i32, i32, i32
  }
  func.func @transform_5(%arg0: i32, %arg1: i32) -> (i32, i32, i32) {
    %c0_i32 = arith.constant 0 : i32
    %c0_i32_0 = arith.constant 0 : i32
    return %arg0, %c0_i32, %arg1 : i32, i32, i32
  }
}

</mosaic_0001>

<llo_original>
// kernel: tpu_custom_call.1
$region0: #{tpu_custom_call.1}
  #allocation0 [shape = 'u32[]', space=smem, size = 0x4, offset = 0x4, fixed_abs, tag = 'smem constant byte address 0x4 - core index']
  #allocation1 [shape = 'u32[144,128]{1,0:T(1,128)}', space=vmem, size = 0x12000, scoped, tag = 'internal scratch']
  %s0 = inlined_call_operand.vmem [shape: f32[2,8,128], index: 0, kind: input, shape index: {}]
  %s1 = inlined_call_operand.vmem [shape: f32[2,1,8,2], index: 1, kind: input, shape index: {}]
  %s2 = inlined_call_operand.vmem [shape: f32[16,8], index: 2, kind: input, shape index: {}]
  %s3 = inlined_call_operand.vmem [shape: f32[16,8], index: 3, kind: input, shape index: {}]
  %s4 = inlined_call_operand.hbm [shape: f32[2,8,128], index: 4, kind: output, shape index: {0}]
  %s5 = inlined_call_operand.hbm [shape: f32[2,8,128], index: 5, kind: output, shape index: {1}]
  %6 = xla_tuple %s4, %s5
  %s7 = sld [smem:[#allocation0]]
  $region61: #{tpu_custom_call.1} parent=0
    _
  %s9 = ssub.s32 1, %s7
  %s10 = scalar_select 0, %s9, %s7
  $region1: #{tpu_custom_call.1} parent=0
    #allocation2 [shape = 'u8[8192]{0}', space=vmem, size = 0x2000, scoped, tag = 'output window, operand 0']
    #allocation3 [shape = 's32[2]{0}', space=sflag, size = 0x8, scoped, tag = 'scoped memory for tpu_custom_call.1']
    #allocation4 [shape = 'u8[8192]{0}', space=vmem, size = 0x2000, scoped, tag = 'output window, operand 1']
    #allocation5 [shape = 's32[2]{0}', space=sflag, size = 0x8, scoped, tag = 'scoped memory for tpu_custom_call.1']
    %11 = vsyncpa [#allocation3], 0
    %s12 = scalar_lea.sflag [#allocation3], 1
    %13 = vsyncpa %s12, 0
    %14 = vsyncpa [#allocation5], 0
    %s15 = scalar_lea.sflag [#allocation5], 1
    %16 = vsyncpa %s15, 0
    loop: start=0, step=1, limit=4
    $region2: #{tpu_custom_call.1} parent=1 // loop_pre_header
      _
    $region3: #{tpu_custom_call.1} parent=1 // loop_header
      %s18 = sphi 0, %s22
      %p19 = scmp.ge.s32.totalorder %s18, 4
      %s25 = sphi 0, %s37
      %s26 = sphi 0, %s33
      %s27 = sphi 0, %s25
      %s28 = sphi 0, %s26
      %s29 = sphi 0, %s27
      %s30 = sphi 0, %s28
      %s42 = sphi 0, %s44
      %s45 = sphi 0, %s42
      %s46 = sphi 0, %s45
      %s62 = sphi 0, %s46
      %s68 = sphi 0, %s70
      %s71 = sphi 0, %s68
      %s72 = sphi 0, %s71
      %s88 = sphi 0, %s72
      %s92 = sphi 0, %s92
      %s94 = sphi 0, %s92
      %s95 = sphi 0, %s94
      %s109 = sphi 0, %s95
      %s113 = sphi 0, %s113
      %s115 = sphi 0, %s113
      %s116 = sphi 0, %s115
      %s130 = sphi 0, %s116
      %s138 = sphi 0, %s140
      %s141 = sphi 0, %s138
      %s142 = sphi 0, %s141
      %s158 = sphi 0, %s142
      %s166 = sphi 0, %s168
      %s169 = sphi 0, %s166
      %s170 = sphi 0, %s169
      %s186 = sphi 0, %s170
    $region4: #{tpu_custom_call.1} parent=1 // loop_header_branch
      %21 = sbr.rel (%p19) target = $region8
    $region5: #{tpu_custom_call.1} parent=1 // loop_body
      %s23 = ssub.s32 %s18, 1
      %s24 = ssub.s32 %s18, 2
      %s31 = sadd.s32 1, %s26
      %p32 = scmp.ge.s32.totalorder %s31, 1
      %s33 = scalar_select %p32, 0, %s31
      %s34 = sadd.s32 1, %s25
      %s35 = scalar_select %p32, %s34, %s25
      %p36 = scmp.ge.s32.totalorder %s35, 2
      %s37 = scalar_select %p36, 0, %s35
      %s38 = ssub.s32 %s25, %s37
      %s39 = ssub.s32 %s26, %s33
      %s40 = sor.u32 %s38, %s39
      %p41 = scmp.eq.s32.totalorder %s40, 0
      %s43 = sadd.s32 %s42, 1
      %s44 = scalar_select %p41, %s42, %s43
      %p47 = pneg %p41
      %p48 = scmp.eq.s32.totalorder %s18, 1
      %p49 = por %p47, %p48
      %p50 = scmp.ne.s32.totalorder %s42, %s45
      %p51 = scmp.eq.s32.totalorder %s18, 0
      %p52 = por %p50, %p51
      %p53 = scmp.ne.s32.totalorder %s42, %s45
      %p54 = scmp.eq.s32.totalorder %s23, 1
      %p55 = por %p53, %p54
      %p56 = scmp.ne.s32.totalorder %s45, %s46
      %p57 = scmp.eq.s32.totalorder %s23, 0
      %p58 = por %p56, %p57
      %p59 = scmp.ne.s32.totalorder %s45, %s46
      %p60 = scmp.eq.s32.totalorder %s24, 1
      %p61 = por %p59, %p60
      %p63 = scmp.ne.s32.totalorder %s46, %s62
      %p64 = scmp.eq.s32.totalorder %s24, 0
      %p65 = por %p63, %p64
      %s66 = ssub.s32 %s25, %s37
      %p67 = scmp.eq.s32.totalorder %s66, 0
      %s69 = sadd.s32 %s68, 1
      %s70 = scalar_select %p67, %s68, %s69
      %p73 = pneg %p67
      %p74 = scmp.eq.s32.totalorder %s18, 1
      %p75 = por %p73, %p74
      %p76 = scmp.ne.s32.totalorder %s68, %s71
      %p77 = scmp.eq.s32.totalorder %s18, 0
      %p78 = por %p76, %p77
      %p79 = scmp.ne.s32.totalorder %s68, %s71
      %p80 = scmp.eq.s32.totalorder %s23, 1
      %p81 = por %p79, %p80
      %p82 = scmp.ne.s32.totalorder %s71, %s72
      %p83 = scmp.eq.s32.totalorder %s23, 0
      %p84 = por %p82, %p83
      %p85 = scmp.ne.s32.totalorder %s71, %s72
      %p86 = scmp.eq.s32.totalorder %s24, 1
      %p87 = por %p85, %p86
      %p89 = scmp.ne.s32.totalorder %s72, %s88
      %p90 = scmp.eq.s32.totalorder %s24, 0
      %p91 = por %p89, %p90
      %s93 = sadd.s32 %s92, 1
      %p96 = scmp.eq.s32.totalorder %s18, 1
      %p97 = scmp.ne.s32.totalorder %s92, %s94
      %p98 = scmp.eq.s32.totalorder %s18, 0
      %p99 = por %p97, %p98
      %p100 = scmp.ne.s32.totalorder %s92, %s94
      %p101 = scmp.eq.s32.totalorder %s23, 1
      %p102 = por %p100, %p101
      %p103 = scmp.ne.s32.totalorder %s94, %s95
      %p104 = scmp.eq.s32.totalorder %s23, 0
      %p105 = por %p103, %p104
      %p106 = scmp.ne.s32.totalorder %s94, %s95
      %p107 = scmp.eq.s32.totalorder %s24, 1
      %p108 = por %p106, %p107
      %p110 = scmp.ne.s32.totalorder %s95, %s109
      %p111 = scmp.eq.s32.totalorder %s24, 0
      %p112 = por %p110, %p111
      %s114 = sadd.s32 %s113, 1
      %p117 = scmp.eq.s32.totalorder %s18, 1
      %p118 = scmp.ne.s32.totalorder %s113, %s115
      %p119 = scmp.eq.s32.totalorder %s18, 0
      %p120 = por %p118, %p119
      %p121 = scmp.ne.s32.totalorder %s113, %s115
      %p122 = scmp.eq.s32.totalorder %s23, 1
      %p123 = por %p121, %p122
      %p124 = scmp.ne.s32.totalorder %s115, %s116
      %p125 = scmp.eq.s32.totalorder %s23, 0
      %p126 = por %p124, %p125
      %p127 = scmp.ne.s32.totalorder %s115, %s116
      %p128 = scmp.eq.s32.totalorder %s24, 1
      %p129 = por %p127, %p128
      %p131 = scmp.ne.s32.totalorder %s116, %s130
      %p132 = scmp.eq.s32.totalorder %s24, 0
      %p133 = por %p131, %p132
      %s134 = ssub.s32 %s25, %s37
      %s135 = ssub.s32 %s26, %s33
      %s136 = sor.u32 %s134, %s135
      %p137 = scmp.eq.s32.totalorder %s136, 0
      %s139 = sadd.s32 %s138, 1
      %s140 = scalar_select %p137, %s138, %s139
      %p143 = pneg %p137
      %p144 = scmp.eq.s32.totalorder %s18, 1
      %p145 = por %p143, %p144
      %p146 = scmp.ne.s32.totalorder %s138, %s141
      %p147 = scmp.eq.s32.totalorder %s18, 0
      %p148 = por %p146, %p147
      %p149 = scmp.ne.s32.totalorder %s138, %s141
      %p150 = scmp.eq.s32.totalorder %s23, 1
      %p151 = por %p149, %p150
      %p152 = scmp.ne.s32.totalorder %s141, %s142
      %p153 = scmp.eq.s32.totalorder %s23, 0
      %p154 = por %p152, %p153
      %p155 = scmp.ne.s32.totalorder %s141, %s142
      %p156 = scmp.eq.s32.totalorder %s24, 1
      %p157 = por %p155, %p156
      %p159 = scmp.ne.s32.totalorder %s142, %s158
      %p160 = scmp.eq.s32.totalorder %s24, 0
      %p161 = por %p159, %p160
      %s162 = ssub.s32 %s25, %s37
      %s163 = ssub.s32 %s26, %s33
      %s164 = sor.u32 %s162, %s163
      %p165 = scmp.eq.s32.totalorder %s164, 0
      %s167 = sadd.s32 %s166, 1
      %s168 = scalar_select %p165, %s166, %s167
      %p171 = pneg %p165
      %p172 = scmp.eq.s32.totalorder %s18, 1
      %p173 = por %p171, %p172
      %p174 = scmp.ne.s32.totalorder %s166, %s169
      %p175 = scmp.eq.s32.totalorder %s18, 0
      %p176 = por %p174, %p175
      %p177 = scmp.ne.s32.totalorder %s166, %s169
      %p178 = scmp.eq.s32.totalorder %s23, 1
      %p179 = por %p177, %p178
      %p180 = scmp.ne.s32.totalorder %s169, %s170
      %p181 = scmp.eq.s32.totalorder %s23, 0
      %p182 = por %p180, %p181
      %p183 = scmp.ne.s32.totalorder %s169, %s170
      %p184 = scmp.eq.s32.totalorder %s24, 1
      %p185 = por %p183, %p184
      %p187 = scmp.ne.s32.totalorder %s170, %s186
      %p188 = scmp.eq.s32.totalorder %s24, 0
      %p189 = por %p187, %p188
      %p190 = scmp.le.s32.totalorder 1, %s18
      %p191 = scmp.lt.s32.totalorder %s18, 3
      %p192 = pnand %p190, %p191
      %p193 = pneg %p192
      // Predicated region
      $region9: #{tpu_custom_call.1} parent=5 // pred_check
        _
      $region10: #{tpu_custom_call.1} parent=5 // pred_check_branch
        %195 = sbr.rel (%p192) target = $region12
      $region11: #{tpu_custom_call.1} parent=5 // pred_region
        %s196 = ssub.s32 %s18, 1
        // Predicated region
        $region13: #{tpu_custom_call.1} parent=11 // pred_check
          %p197 = pneg %p105
        $region14: #{tpu_custom_call.1} parent=11 // pred_check_branch
          %199 = sbr.rel (%p197) target = $region16
        $region15: #{tpu_custom_call.1} parent=11 // pred_region
          _
        $region16: #{tpu_custom_call.1} parent=11 // pred_fallthru
          _
        // Predicated region
        $region17: #{tpu_custom_call.1} parent=11 // pred_check
          %p200 = pneg %p126
        $region18: #{tpu_custom_call.1} parent=11 // pred_check_branch
          %202 = sbr.rel (%p200) target = $region20
        $region19: #{tpu_custom_call.1} parent=11 // pred_region
          _
        $region20: #{tpu_custom_call.1} parent=11 // pred_fallthru
          _
      $region12: #{tpu_custom_call.1} parent=5 // pred_fallthru
        _
      %p203 = scmp.lt.s32.totalorder %s18, 2
      // Predicated region
      $region21: #{tpu_custom_call.1} parent=5 // pred_check
        %p204 = pneg %p203
      $region22: #{tpu_custom_call.1} parent=5 // pred_check_branch
        %206 = sbr.rel (%p204) target = $region24
      $region23: #{tpu_custom_call.1} parent=5 // pred_region
        // Predicated region
        $region25: #{tpu_custom_call.1} parent=23 // pred_check
          %p207 = pneg %p52
        $region26: #{tpu_custom_call.1} parent=23 // pred_check_branch
          %209 = sbr.rel (%p207) target = $region28
        $region27: #{tpu_custom_call.1} parent=23 // pred_region
          %p210 = scmp.lt.s32.totalorder %s25, 1
          %s211 = scalar_select %p210, %s25, 1
          %p212 = scmp.lt.s32.totalorder %s26, 0
          %s213 = scalar_select %p212, %s26, 0
          %s214 = sadd.s32 %s213, %s211
          %s215 = smul.addr %s214, 8
          %s216 = scalar_lea.vmem %s0, %s215
        $region28: #{tpu_custom_call.1} parent=23 // pred_fallthru
          _
        // Predicated region
        $region29: #{tpu_custom_call.1} parent=23 // pred_check
          %p217 = pneg %p78
        $region30: #{tpu_custom_call.1} parent=23 // pred_check_branch
          %219 = sbr.rel (%p217) target = $region32
        $region31: #{tpu_custom_call.1} parent=23 // pred_region
          %p220 = scmp.lt.s32.totalorder %s25, 1
          %s221 = scalar_select %p220, %s25, 1
          %s222 = smul.addr %s221, 8
          %s223 = scalar_lea.vmem %s1, %s222
        $region32: #{tpu_custom_call.1} parent=23 // pred_fallthru
          _
      $region24: #{tpu_custom_call.1} parent=5 // pred_fallthru
        _
      %p224 = scmp.le.s32.totalorder 1, %s18
      %p225 = scmp.lt.s32.totalorder %s18, 3
      %p226 = pnand %p224, %p225
      %p227 = pneg %p226
      // Predicated region
      $region33: #{tpu_custom_call.1} parent=5 // pred_check
        _
      $region34: #{tpu_custom_call.1} parent=5 // pred_check_branch
        %229 = sbr.rel (%p226) target = $region36
      $region35: #{tpu_custom_call.1} parent=5 // pred_region
        %s230 = ssub.s32 %s18, 1
        %p231 = scmp.lt.s32.totalorder %s27, 1
        %s232 = scalar_select %p231, %s27, 1
        %p233 = scmp.lt.s32.totalorder %s28, 0
        %s234 = scalar_select %p233, %s28, 0
        %s235 = sadd.s32 %s234, %s232
        %s236 = smul.addr %s235, 8
        %s237 = scalar_lea.vmem %s0, %s236
        %p238 = pneg %p58
        %p239 = pneg %p55
        %p240 = scmp.lt.s32.totalorder %s27, 1
        %s241 = scalar_select %p240, %s27, 1
        %s242 = smul.addr %s241, 8
        %s243 = scalar_lea.vmem %s1, %s242
        %p244 = pneg %p84
        %p245 = pneg %p81
        %p246 = pneg %p105
        %p247 = pneg %p102
        %p248 = pneg %p126
        %p249 = pneg %p123
        %p250 = pneg %p154
        %p251 = pneg %p151
        %s252 = sand.u32 %s141, 1
        %s253 = scalar_lea.sflag [#allocation3], %s252
        %s254 = sand.u32 %s141, 1
        %s255 = smul.addr %s254, 8
        %s256 = scalar_lea.vmem [#allocation2], %s255
        %p257 = pneg %p182
        %p258 = pneg %p179
        %s259 = sand.u32 %s169, 1
        %s260 = scalar_lea.sflag [#allocation5], %s259
        %s261 = sand.u32 %s169, 1
        %s262 = smul.addr %s261, 8
        %s263 = scalar_lea.vmem [#allocation4], %s262
        %p264 = scmp.lt.s32.totalorder %s27, 1
        %s265 = scalar_select %p264, %s27, 1
        %p266 = scmp.lt.s32.totalorder %s28, 0
        %s267 = scalar_select %p266, %s28, 0
        %s268 = sadd.s32 %s267, %s265
        %s269 = smul.addr %s268, 8
        %s270 = scalar_lea.vmem %s0, %s269
        %p271 = scmp.lt.s32.totalorder %s27, 1
        %s272 = scalar_select %p271, %s27, 1
        %s273 = smul.addr %s272, 8
        %s274 = scalar_lea.vmem %s1, %s273
        %v275 = vld [vmem:[%s270] sm:$0xff]
        %s276 = smul.u32 %s28, 8
        %s277 = scalar_lea.vmem %s274, %s276
        %v278 = vld [vmem:[%s277] sm:$0xff]
        %280 = vrot.lane.b32.xlu0 %v275, 2
        %v281 = vpop.permute.xlu0 %280
        %vm283 = vcmask 15360
        %v284 = vsel %vm283, %v278, %v281
        %v285 = vld [vmem:[%s3] sm:$0xff]
        %v286 = vld [vmem:[%s3 + $0x8] sm:$0xff]
        %v287 = vld [vmem:[%s2] sm:$0xff]
        %v288 = vld [vmem:[%s2 + $0x8] sm:$0xff]
        %vm289 = vcmask 64512
        %v291 = vsel %vm289, %v287, 0
        %v294 = vsel %vm289, %v288, 0
        %296 = vmatprep.subr.mxu0 0.0
        %297 = vmatpush1.msra.mxu0 0.0
        %298 = vmatprep.subr.mxu0 0.0
        %299 = vmatpush1.msra.mxu0 0.0
        %300 = vmatprep.subr.mxu0 0.0
        %301 = vmatpush1.msra.mxu0 0.0
        %302 = vmatprep.subr.mxu0 0.0
        %303 = vmatpush1.msra.mxu0 0.0
        %304 = vmatprep.subr.mxu0 0.0
        %305 = vmatpush1.msra.mxu0 0.0
        %306 = vmatprep.subr.mxu0 0.0
        %307 = vmatpush1.msra.mxu0 0.0
        %308 = vmatprep.subr.mxu0 0.0
        %309 = vmatpush1.msra.mxu0 0.0
        %310 = vmatprep.subr.mxu0 0.0
        %311 = vmatpush1.msra.mxu0 0.0
        %312 = vmatprep.subr.mxu0 0.0
        %313 = vmatpush1.msra.mxu0 0.0
        %314 = vmatprep.subr.mxu0 0.0
        %315 = vmatpush1.msra.mxu0 0.0
        %316 = vmatprep.subr.mxu0 0.0
        %317 = vmatpush1.msra.mxu0 0.0
        %318 = vmatprep.subr.mxu0 0.0
        %319 = vmatpush1.msra.mxu0 0.0
        %320 = vmatprep.subr.mxu0 0.0
        %321 = vmatpush1.msra.mxu0 0.0
        %322 = vmatprep.subr.mxu0 0.0
        %323 = vmatpush1.msra.mxu0 0.0
        %324 = vmatprep.subr.mxu0 0.0
        %325 = vmatpush1.msra.mxu0 0.0
        %326 = vmatprep.subr.mxu0 0.0
        %327 = vmatpush1.msra.mxu0 %v284
        %328 = vmatprep.subr.mxu0 0.0
        %329 = vmatpush2.msra.mxu0 0.0
        %330 = vmatprep.subr.mxu0 0.0
        %331 = vmatpush2.msra.mxu0 0.0
        %332 = vmatprep.subr.mxu0 0.0
        %333 = vmatpush2.msra.mxu0 0.0
        %334 = vmatprep.subr.mxu0 0.0
        %335 = vmatpush2.msra.mxu0 0.0
        %336 = vmatprep.subr.mxu0 0.0
        %337 = vmatpush2.msra.mxu0 0.0
        %338 = vmatprep.subr.mxu0 0.0
        %339 = vmatpush2.msra.mxu0 0.0
        %340 = vmatprep.subr.mxu0 0.0
        %341 = vmatpush2.msra.mxu0 0.0
        %342 = vmatprep.subr.mxu0 0.0
        %343 = vmatpush2.msra.mxu0 0.0
        %344 = vmatprep.subr.mxu0 0.0
        %345 = vmatpush2.msra.mxu0 0.0
        %346 = vmatprep.subr.mxu0 0.0
        %347 = vmatpush2.msra.mxu0 0.0
        %348 = vmatprep.subr.mxu0 0.0
        %349 = vmatpush2.msra.mxu0 0.0
        %350 = vmatprep.subr.mxu0 0.0
        %351 = vmatpush2.msra.mxu0 0.0
        %352 = vmatprep.subr.mxu0 0.0
        %353 = vmatpush2.msra.mxu0 0.0
        %354 = vmatprep.subr.mxu0 0.0
        %355 = vmatpush2.msra.mxu0 0.0
        %356 = vmatprep.subr.mxu0 0.0
        %357 = vmatpush2.msra.mxu0 0.0
        %358 = vmatprep.subr.mxu0 0.0
        %359 = vmatpush2.msra.mxu0 0.0
        %360 = vmatprep.mubr.f32.mxu0 0.0
        %361 = vmatmul.mubr.f32.gmra.mxu0 %v291
        %v362 = vpop.f32.mrf.mxu0
        %v363 = vadd.f32 0.0, %v362
        %v364 = vpop.f32.mrf.mxu0
        %365 = vmatprep.mubr.f32.mxu0 0.0
        %366 = vmatmul.mubr.f32.gmra.mxu0 %v294
        %v367 = vpop.f32.mrf.mxu0
        %v368 = vadd.f32 0.0, %v367
        %v369 = vpop.f32.mrf.mxu0
        %370 = vdwg.mxu0
        %v372 = vsel %vm289, %v285, 0
        %v375 = vsel %vm289, %v286, 0
        %377 = vmatprep.subr.mxu0 0.0
        %378 = vmatpush1.msra.mxu0 0.0
        %379 = vmatprep.subr.mxu0 0.0
        %380 = vmatpush1.msra.mxu0 0.0
        %381 = vmatprep.subr.mxu0 0.0
        %382 = vmatpush1.msra.mxu0 0.0
        %383 = vmatprep.subr.mxu0 0.0
        %384 = vmatpush1.msra.mxu0 0.0
        %385 = vmatprep.subr.mxu0 0.0
        %386 = vmatpush1.msra.mxu0 0.0
        %387 = vmatprep.subr.mxu0 0.0
        %388 = vmatpush1.msra.mxu0 0.0
        %389 = vmatprep.subr.mxu0 0.0
        %390 = vmatpush1.msra.mxu0 0.0
        %391 = vmatprep.subr.mxu0 0.0
        %392 = vmatpush1.msra.mxu0 0.0
        %393 = vmatprep.subr.mxu0 0.0
        %394 = vmatpush1.msra.mxu0 0.0
        %395 = vmatprep.subr.mxu0 0.0
        %396 = vmatpush1.msra.mxu0 0.0
        %397 = vmatprep.subr.mxu0 0.0
        %398 = vmatpush1.msra.mxu0 0.0
        %399 = vmatprep.subr.mxu0 0.0
        %400 = vmatpush1.msra.mxu0 0.0
        %401 = vmatprep.subr.mxu0 0.0
        %402 = vmatpush1.msra.mxu0 0.0
        %403 = vmatprep.subr.mxu0 0.0
        %404 = vmatpush1.msra.mxu0 0.0
        %405 = vmatprep.subr.mxu0 0.0
        %406 = vmatpush1.msra.mxu0 0.0
        %407 = vmatprep.subr.mxu0 0.0
        %408 = vmatpush1.msra.mxu0 %v275
        %409 = vmatprep.subr.mxu0 0.0
        %410 = vmatpush2.msra.mxu0 0.0
        %411 = vmatprep.subr.mxu0 0.0
        %412 = vmatpush2.msra.mxu0 0.0
        %413 = vmatprep.subr.mxu0 0.0
        %414 = vmatpush2.msra.mxu0 0.0
        %415 = vmatprep.subr.mxu0 0.0
        %416 = vmatpush2.msra.mxu0 0.0
        %417 = vmatprep.subr.mxu0 0.0
        %418 = vmatpush2.msra.mxu0 0.0
        %419 = vmatprep.subr.mxu0 0.0
        %420 = vmatpush2.msra.mxu0 0.0
        %421 = vmatprep.subr.mxu0 0.0
        %422 = vmatpush2.msra.mxu0 0.0
        %423 = vmatprep.subr.mxu0 0.0
        %424 = vmatpush2.msra.mxu0 0.0
        %425 = vmatprep.subr.mxu0 0.0
        %426 = vmatpush2.msra.mxu0 0.0
        %427 = vmatprep.subr.mxu0 0.0
        %428 = vmatpush2.msra.mxu0 0.0
        %429 = vmatprep.subr.mxu0 0.0
        %430 = vmatpush2.msra.mxu0 0.0
        %431 = vmatprep.subr.mxu0 0.0
        %432 = vmatpush2.msra.mxu0 0.0
        %433 = vmatprep.subr.mxu0 0.0
        %434 = vmatpush2.msra.mxu0 0.0
        %435 = vmatprep.subr.mxu0 0.0
        %436 = vmatpush2.msra.mxu0 0.0
        %437 = vmatprep.subr.mxu0 0.0
        %438 = vmatpush2.msra.mxu0 0.0
        %439 = vmatprep.subr.mxu0 0.0
        %440 = vmatpush2.msra.mxu0 0.0
        %441 = vmatprep.mubr.f32.mxu0 0.0
        %442 = vmatmul.mubr.f32.gmra.mxu0 %v372
        %v443 = vpop.f32.mrf.mxu0
        %v444 = vadd.f32 %v363, %v443
        %v445 = vpop.f32.mrf.mxu0
        %446 = vmatprep.mubr.f32.mxu0 0.0
        %447 = vmatmul.mubr.f32.gmra.mxu0 %v375
        %v448 = vpop.f32.mrf.mxu0
        %v449 = vadd.f32 %v368, %v448
        %v450 = vpop.f32.mrf.mxu0
        %451 = vdwg.mxu0
        %452 = vst [vmem:[%s256] sm:$0xff] %v444
        %453 = vst [vmem:[%s263] sm:$0xff] %v449
        %p454 = scmp.eq.s32.totalorder %s28, 0
        // Predicated region
        $region37: #{tpu_custom_call.1} parent=35 // pred_check
          %p455 = pneg %p454
        $region38: #{tpu_custom_call.1} parent=35 // pred_check_branch
          %457 = sbr.rel (%p455) target = $region40
        $region39: #{tpu_custom_call.1} parent=35 // pred_region
          %458 = vst.msk [vmem:[%s256] sm:$0xff] %vm283, 0.0
          %459 = vst.msk [vmem:[%s263] sm:$0xff] %vm283, 0.0
        $region40: #{tpu_custom_call.1} parent=35 // pred_fallthru
          _
        %s460 = sand.u32 %s141, 1
        %s461 = scalar_lea.sflag [#allocation3], %s460
        %s462 = sand.u32 %s141, 1
        %s463 = smul.addr %s462, 8
        %s464 = scalar_lea.vmem [#allocation2], %s463
        %s465 = sand.u32 %s169, 1
        %s466 = scalar_lea.sflag [#allocation5], %s465
        %s467 = sand.u32 %s169, 1
        %s468 = smul.addr %s467, 8
        %s469 = scalar_lea.vmem [#allocation4], %s468
        // Predicated region
        $region41: #{tpu_custom_call.1} parent=35 // pred_check
          %p470 = pneg %p151
        $region42: #{tpu_custom_call.1} parent=35 // pred_check_branch
          %472 = sbr.rel (%p470) target = $region44
        $region43: #{tpu_custom_call.1} parent=35 // pred_region
          %s474 = ssub.s32 128, 128
          %475 = vsyncadd %s461, %s474
          %s476 = sadd.s32 %s28, %s27
          %s477 = smul.addr %s476, 128
          %s478 = scalar_lea.hbm %s4, %s477
          %s480 = sshll.u32 %s464, 4
          %s481 = int_to_ptr.vmem [resolvable:$true] %s480
          %483 = dma.vmem_to_hbm [thread:$0]  %s481, 128, %s478, %s461
        $region44: #{tpu_custom_call.1} parent=35 // pred_fallthru
          _
        // Predicated region
        $region45: #{tpu_custom_call.1} parent=35 // pred_check
          %p484 = pneg %p179
        $region46: #{tpu_custom_call.1} parent=35 // pred_check_branch
          %486 = sbr.rel (%p484) target = $region48
        $region47: #{tpu_custom_call.1} parent=35 // pred_region
          %s488 = ssub.s32 128, 128
          %489 = vsyncadd %s466, %s488
          %s490 = sadd.s32 %s28, %s27
          %s491 = smul.addr %s490, 128
          %s492 = scalar_lea.hbm %s5, %s491
          %s494 = sshll.u32 %s469, 4
          %s495 = int_to_ptr.vmem [resolvable:$true] %s494
          %497 = dma.vmem_to_hbm [thread:$0]  %s495, 128, %s492, %s466
        $region48: #{tpu_custom_call.1} parent=35 // pred_fallthru
          _
      $region36: #{tpu_custom_call.1} parent=5 // pred_fallthru
        _
      %p498 = scmp.le.s32.totalorder 2, %s18
      // Predicated region
      $region49: #{tpu_custom_call.1} parent=5 // pred_check
        %p499 = pneg %p498
      $region50: #{tpu_custom_call.1} parent=5 // pred_check_branch
        %501 = sbr.rel (%p499) target = $region52
      $region51: #{tpu_custom_call.1} parent=5 // pred_region
        %s502 = ssub.s32 %s18, 2
        // Predicated region
        $region53: #{tpu_custom_call.1} parent=51 // pred_check
          %p503 = pneg %p157
        $region54: #{tpu_custom_call.1} parent=51 // pred_check_branch
          %505 = sbr.rel (%p503) target = $region56
        $region55: #{tpu_custom_call.1} parent=51 // pred_region
          %s506 = sand.u32 %s142, 1
          %s507 = scalar_lea.sflag [#allocation3], %s506
          %s508 = sand.u32 %s142, 1
          %s509 = smul.addr %s508, 8
          %s510 = scalar_lea.vmem [#allocation2], %s509
          %511 = dma.done %s507, 128
        $region56: #{tpu_custom_call.1} parent=51 // pred_fallthru
          _
        // Predicated region
        $region57: #{tpu_custom_call.1} parent=51 // pred_check
          %p512 = pneg %p185
        $region58: #{tpu_custom_call.1} parent=51 // pred_check_branch
          %514 = sbr.rel (%p512) target = $region60
        $region59: #{tpu_custom_call.1} parent=51 // pred_region
          %s515 = sand.u32 %s170, 1
          %s516 = scalar_lea.sflag [#allocation5], %s515
          %s517 = sand.u32 %s170, 1
          %s518 = smul.addr %s517, 8
          %s519 = scalar_lea.vmem [#allocation4], %s518
          %520 = dma.done %s516, 128
        $region60: #{tpu_custom_call.1} parent=51 // pred_fallthru
          _
      $region52: #{tpu_custom_call.1} parent=5 // pred_fallthru
        _
    $region6: #{tpu_custom_call.1} parent=1 // loop_footer
      %s22 = sadd.s32 1, %s18
    $region7: #{tpu_custom_call.1} parent=1 // loop_footer_branch
      %17 = sbr.rel target = $region3
    $region8: #{tpu_custom_call.1} parent=1 // loop_exit
      _
    %521 = vsyncpa [#allocation3], 1
    %s522 = scalar_lea.sflag [#allocation3], 1
    %523 = vsyncpa %s522, 1
    %524 = vsyncpa [#allocation5], 1
    %s525 = scalar_lea.sflag [#allocation5], 1
    %526 = vsyncpa %s525, 1

</llo_original>
